<compile_context>
chip_gen: v7x
topology: tpu7x:2x2x1
jax: 0.10.0
libtpu: 0.0.40
codegen_flags: <defaults>
</compile_context>

<pallas_src>
import jax
import jax.numpy as jnp
from jax.experimental import pallas as pl
from jax.experimental.pallas import tpu as pltpu


_TARGET_BLOCK_BYTES = 4 * 1024 * 1024   # ~4 MiB/block; 2 in + 2 out buffers = 16 MiB
_VMEM_LIMIT_BYTES = 32 * 1024 * 1024    # explicit scoped-VMEM cap (safe on v5e/v6e/v7x)


def _hswish_kernel(x_ref, o_ref):
    x = x_ref[...].astype(jnp.float32)
    # x * relu6(x + 3) / 6 -- matches the PyTorch reference formula exactly.
    o_ref[...] = (x * jnp.clip(x + 3.0, 0.0, 6.0) / 6.0).astype(o_ref.dtype)


def hswish(x):
    """Elementwise hard-swish of an arbitrarily shaped array via a tiled Pallas TPU kernel."""
    orig_shape = x.shape
    dtype = x.dtype
    n = x.size
    if n == 0:
        return x

    itemsize = jnp.dtype(dtype).itemsize
    sub = max(8, 32 // itemsize)          # sublane multiple: 8 (f32), 16 (bf16), 32 (i8/fp8)

    # Pick a lane-dense width (multiple of 128) that divides n exactly so no pad /
    # output-slice copy is needed (the common ML case). Otherwise pad only up to
    # the 512-lane granularity (<= 511 elements), never up to a block multiple.
    width = None
    for w in (512, 256, 128):
        if n % w == 0:
            width = w
            break
    needs_pad = width is None
    if needs_pad:
        width = 512

    rows = pl.cdiv(n, width)
    flat = x.reshape(-1)
    if needs_pad:
        flat = jnp.pad(flat, (0, rows * width - n))
    x2 = flat.reshape(rows, width)

    # Rows per block: target ~4 MiB per block, rounded to the dtype's sublane multiple.
    block_m = max(sub, (_TARGET_BLOCK_BYTES // (width * itemsize)) // sub * sub)
    if block_m >= rows:
        # Whole slab would fit in one block. Split into two sublane-aligned halves
        # so the "parallel" grid axis has >=2 steps (both v7x TensorCores busy);
        # fall back to a single full-extent block for tiny inputs.
        half = pl.cdiv(rows, 2 * sub) * sub
        block_m = half if (rows > sub and half < rows) else rows

    grid = (pl.cdiv(rows, block_m),)      # ragged last block handled by Pallas masking

    y2 = pl.pallas_call(
        _hswish_kernel,
        out_shape=jax.ShapeDtypeStruct((rows, width), dtype),
        grid=grid,
        in_specs=[pl.BlockSpec((block_m, width), lambda i: (i, 0))],
        out_specs=pl.BlockSpec((block_m, width), lambda i: (i, 0)),
        compiler_params=pltpu.CompilerParams(
            dimension_semantics=("parallel",),
            vmem_limit_bytes=_VMEM_LIMIT_BYTES,
        ),
        cost_estimate=pl.CostEstimate(
            flops=5 * n, transcendentals=0, bytes_accessed=2 * n * itemsize),
    )(x2)

    out_flat = y2.reshape(-1)
    if needs_pad:
        out_flat = out_flat[:n]
    return out_flat.reshape(orig_shape)


if __name__ == "__main__":
    key = jax.random.PRNGKey(0)

    def ref_hswish(v):
        vf = v.astype(jnp.float32)
        return (vf * jnp.clip(vf + 3.0, 0.0, 6.0) / 6.0).astype(v.dtype)

    tests = [
        (2, 4, 16, 16),   # module's expected (N, C, H, W); n % 512 == 0 -> no pad, 1 block
        (8, 64, 64),      # multi-block grid (>= 2 parallel steps)
        (5, 9, 128),      # width=128 path with a ragged (masked) last block
        (3, 7, 11),       # n not a multiple of 128 -> pad/slice fallback path
    ]
    for shape in tests:
        key, k = jax.random.split(key)
        x = jax.random.normal(k, shape, jnp.float32) * 4.0   # span both relu6 knees
        out = hswish(x)
        jax.block_until_ready(out)
        ref = ref_hswish(x)
        assert out.shape == x.shape and out.dtype == x.dtype
        assert jnp.allclose(out, ref, atol=1e-6, rtol=1e-6), (
            shape, float(jnp.max(jnp.abs(out - ref))))

    print("KERNEL_OK")
</pallas_src>

<mosaic_0001>
module attributes {stable_mosaic.version = 11 : i64} {
  func.func @_hswish_kernel(%arg0: i32, %arg1: memref<4x512xf32, #tpu.memory_space<vmem>>, %arg2: memref<4x512xf32, #tpu.memory_space<vmem>>) attributes {dimension_semantics = [#tpu.dimension_semantics<parallel>], iteration_bounds = array<i64: 1>, scalar_prefetch = 0 : i64, scratch_operands = 0 : i64, tpu.core_type = #tpu.core_type<tc>, window_params = [{transform_indices = @transform_0, window_bounds = array<i64: 4, 512>}, {transform_indices = @transform_1, window_bounds = array<i64: 4, 512>}]} {
    %c0 = arith.constant 0 : index
    %c0_0 = arith.constant 0 : index
    %0 = vector.load %arg1[%c0, %c0_0] : memref<4x512xf32, #tpu.memory_space<vmem>>, vector<4x512xf32>
    %cst = arith.constant 3.000000e+00 : f32
    %1 = vector.broadcast %cst : f32 to vector<4x512xf32>
    %2 = arith.addf %0, %1 : vector<4x512xf32>
    %cst_1 = arith.constant 0.000000e+00 : f32
    %cst_2 = arith.constant 6.000000e+00 : f32
    %3 = vector.broadcast %cst_1 : f32 to vector<4x512xf32>
    %4 = arith.maximumf %3, %2 : vector<4x512xf32>
    %5 = vector.broadcast %cst_2 : f32 to vector<4x512xf32>
    %6 = arith.minimumf %5, %4 : vector<4x512xf32>
    %7 = arith.mulf %0, %6 : vector<4x512xf32>
    %cst_3 = arith.constant 6.000000e+00 : f32
    %8 = vector.broadcast %cst_3 : f32 to vector<4x512xf32>
    %9 = arith.divf %7, %8 : vector<4x512xf32>
    %c0_4 = arith.constant 0 : index
    %c0_5 = arith.constant 0 : index
    %10 = vector.load %arg2[%c0_4, %c0_5] : memref<4x512xf32, #tpu.memory_space<vmem>>, vector<4x512xf32>
    tpu.vector_store %arg2[%c0_4, %c0_5], %9 {strides = array<i32>} : memref<4x512xf32, #tpu.memory_space<vmem>>, vector<4x512xf32>,
    return
  }
  func.func @transform_0(%arg0: i32) -> (i32, i32) {
    %c0_i32 = arith.constant 0 : i32
    %c0_i32_0 = arith.constant 0 : i32
    return %arg0, %c0_i32 : i32, i32
  }
  func.func @transform_1(%arg0: i32) -> (i32, i32) {
    %c0_i32 = arith.constant 0 : i32
    %c0_i32_0 = arith.constant 0 : i32
    return %arg0, %c0_i32 : i32, i32
  }
}

</mosaic_0001>

<llo_original>
// kernel: tpu_custom_call.1
$region0: #{tpu_custom_call.1}
  #allocation0 [shape = 'u32[]', space=smem, size = 0x4, offset = 0x4, fixed_abs, tag = 'smem constant byte address 0x4 - core index']
  #allocation1 [shape = 'u32[144,128]{1,0:T(1,128)}', space=vmem, size = 0x12000, scoped, tag = 'internal scratch']
  %s0 = inlined_call_operand.hbm [shape: f32[4,512], index: 0, kind: input, shape index: {}]
  %s1 = inlined_call_operand.hbm [shape: f32[4,512], index: 1, kind: output, shape index: {}]
  %s2 = sld [smem:[#allocation0]]
  $region18: #{tpu_custom_call.1} parent=0
    _
  %s4 = ssub.s32 1, %s2
  %s5 = scalar_select 0, %s4, %s2
  $region1: #{tpu_custom_call.1} parent=0
    #allocation2 [shape = 'u8[8192]{0}', space=vmem, size = 0x2000, scoped, tag = 'input window, operand 0, single buffered']
    #allocation3 [shape = 's32[1]{0}', space=sflag, size = 0x4, scoped, tag = 'scoped memory for tpu_custom_call.1']
    #allocation4 [shape = 's32[1]{0}', space=sflag, size = 0x4, scoped, tag = 'scoped memory for tpu_custom_call.1']
    #allocation5 [shape = 'u8[8192]{0}', space=vmem, size = 0x2000, scoped, tag = 'output window, operand 0, single buffered']
    %6 = vsyncpa [#allocation3], 0
    %7 = vsyncpa [#allocation4], 0
    // Predicated region
    $region2: #{tpu_custom_call.1} parent=1 // pred_check
      _
    $region3: #{tpu_custom_call.1} parent=1 // pred_check_branch
      %9 = sbr.rel (0) target = $region5
    $region4: #{tpu_custom_call.1} parent=1 // pred_region
      %s11 = ssub.s32 256, 256
      %12 = vsyncadd [#allocation3], %s11
      %s14 = sshll.u32 [#allocation2], 4
      %s15 = int_to_ptr.vmem [resolvable:$true] %s14
      %17 = dma.hbm_to_vmem [thread:$0]  %s0, 256, %s15, [#allocation3]
    $region5: #{tpu_custom_call.1} parent=1 // pred_fallthru
      _
    // Predicated region
    $region6: #{tpu_custom_call.1} parent=1 // pred_check
      _
    $region7: #{tpu_custom_call.1} parent=1 // pred_check_branch
      %19 = sbr.rel (0) target = $region9
    $region8: #{tpu_custom_call.1} parent=1 // pred_region
      %20 = dma.done [#allocation3], 256
    $region9: #{tpu_custom_call.1} parent=1 // pred_fallthru
      _
    %v21 = vld [vmem:[#allocation2] sm:$0xff]
    %v22 = vld [vmem:[#allocation2 + $0x8] sm:$0xff]
    %v23 = vadd.f32 %v21, 3.0
    %v24 = vadd.f32 %v22, 3.0
    %v25 = vmax.f32 %v23, 0.0
    %v26 = vmax.f32 %v24, 0.0
    %v27 = vmin.f32 %v25, 6.0
    %v28 = vmin.f32 %v26, 6.0
    %v29 = vmul.f32 %v21, %v27
    %v30 = vmul.f32 %v22, %v28
    %v31 = vrcp.pop 6.0
    %v32 = vmul.f32 %v29, %v31
    %v33 = vmul.f32 %v30, %v31
    %34 = vst [vmem:[#allocation5] sm:$0xff] %v32
    %35 = vst [vmem:[#allocation5 + $0x8] sm:$0xff] %v33
    // Predicated region
    $region10: #{tpu_custom_call.1} parent=1 // pred_check
      _
    $region11: #{tpu_custom_call.1} parent=1 // pred_check_branch
      %37 = sbr.rel (0) target = $region13
    $region12: #{tpu_custom_call.1} parent=1 // pred_region
      %s39 = ssub.s32 256, 256
      %40 = vsyncadd [#allocation4], %s39
      %s42 = sshll.u32 [#allocation5], 4
      %s43 = int_to_ptr.vmem [resolvable:$true] %s42
      %45 = dma.vmem_to_hbm [thread:$0]  %s43, 256, %s1, [#allocation4]
    $region13: #{tpu_custom_call.1} parent=1 // pred_fallthru
      _
    // Predicated region
    $region14: #{tpu_custom_call.1} parent=1 // pred_check
      _
    $region15: #{tpu_custom_call.1} parent=1 // pred_check_branch
      %47 = sbr.rel (0) target = $region17
    $region16: #{tpu_custom_call.1} parent=1 // pred_region
      %48 = dma.done [#allocation4], 256
    $region17: #{tpu_custom_call.1} parent=1 // pred_fallthru
      _
    %49 = vsyncpa [#allocation3], 1
    %50 = vsyncpa [#allocation4], 1

</llo_original>
